<compile_context>
chip_gen: v6e
topology: v6e:2x2x1
jax: 0.10.0
libtpu: 0.0.40
codegen_flags: <defaults>
</compile_context>

<pallas_src>
import math

import jax
import jax.numpy as jnp
import numpy as np
from jax import lax
from jax.experimental import pallas as pl
from jax.experimental.pallas import tpu as pltpu


# --------------------------------------------------------------------------
# Kernel: one grid step = one block of `rows` sequence positions in native
# layout (rows, h*d).  NOTE: as in the PyTorch reference's SDPA call, the
# (causal) attention is over the head-group axis g, NOT the sequence axis.
# --------------------------------------------------------------------------
def _build_kernel(head_dim, group_specs, zero_heads, num_groups, is_causal):
    d = head_dim
    scale = 1.0 / math.sqrt(d)
    inv_ng = 1.0 / float(num_groups)
    f32 = jnp.float32

    def kernel(q_ref, k_ref, v_ref, o_ref, x_scratch):
        rows = q_ref.shape[0]
        seg_mats = {}  # cache indicator matrices per segment length

        for (hmin, g, s) in group_specs:
            nseg = rows // s

            def lanes(a, _hmin=hmin):
                c0 = (_hmin + a) * d
                return slice(c0, c0 + d)

            # ---- tiny attention over the g heads of this group, per row ----
            q_h = [q_ref[:, lanes(a)].astype(f32) for a in range(g)]
            k_h = [k_ref[:, lanes(a)].astype(f32) for a in range(g)]
            v_h = [v_ref[:, lanes(a)].astype(f32) for a in range(g)]
            for a in range(g):
                j_hi = (a + 1) if is_causal else g
                scores = [jnp.sum(q_h[a] * k_h[b], axis=1, keepdims=True) * scale
                          for b in range(j_hi)]                       # (rows, 1)
                m = scores[0]
                for sc in scores[1:]:
                    m = jnp.maximum(m, sc)
                ps = [jnp.exp(sc - m) for sc in scores]
                l = ps[0]
                for p in ps[1:]:
                    l = l + p
                acc = ps[0] * v_h[0]
                for b in range(1, j_hi):
                    acc = acc + ps[b] * v_h[b]
                # stage un-normalized per-head output in f32 VMEM scratch
                x_scratch[:, lanes(a)] = acc * pl.reciprocal(l, approx=False)

            # ---- per-(segment, d) denominator: sum over s rows and g heads ----
            xsum = x_scratch[:, lanes(0)]
            for a in range(1, g):
                xsum = xsum + x_scratch[:, lanes(a)]

            if s not in seg_mats:
                r_i = lax.broadcasted_iota(jnp.int32, (rows, nseg), 0)
                s_i = lax.broadcasted_iota(jnp.int32, (rows, nseg), 1) * s
                spread = jnp.logical_and(r_i >= s_i, r_i < s_i + s).astype(f32)
                r_t = lax.broadcasted_iota(jnp.int32, (nseg, rows), 1)
                s_t = lax.broadcasted_iota(jnp.int32, (nseg, rows), 0) * s
                gather = jnp.logical_and(r_t >= s_t, r_t < s_t + s).astype(f32)
                seg_mats[s] = (gather, spread)
            gather, spread = seg_mats[s]

            denom = jnp.dot(gather, xsum, preferred_element_type=f32)  # (nseg, d)
            # fold the final 1/num_groups into the normalization
            inv_denom = pl.reciprocal(denom + 1e-8, approx=False) * inv_ng
            inv_rows = jnp.dot(spread, inv_denom,
                               preferred_element_type=f32)             # (rows, d)

            for a in range(g):
                o_ref[:, lanes(a)] = (x_scratch[:, lanes(a)] * inv_rows
                                      ).astype(o_ref.dtype)

        # heads whose group was skipped (n < s) contribute zeros
        for hz in zero_heads:
            o_ref[:, hz * d:(hz + 1) * d] = jnp.zeros((rows, d), o_ref.dtype)

    return kernel


# --------------------------------------------------------------------------
# Wrapper reproducing SimpleImprovedDilatedAttention.forward
# --------------------------------------------------------------------------
def simple_improved_dilated_attention(q, k, v, segment_lengths, dilation_rates,
                                      is_causal=False):
    assert len(segment_lengths) == len(dilation_rates)
    b, n, h, d = q.shape
    num_groups = len(segment_lengths)

    gs = [h // num_groups] * num_groups
    for i in range(h % num_groups):
        gs[i] += 1

    group_specs = []   # (hmin, g, s) for active groups (static)
    zero_heads = []    # heads whose group is skipped because n < s
    for i, (g, r, s) in enumerate(zip(gs, dilation_rates, segment_lengths)):
        hmin = sum(gs[:i])
        if g == 0:
            continue
        if n < s:
            zero_heads.extend(range(hmin, hmin + g))
            continue
        assert n % s == 0, "sequence length must be divisible by segment length"
        offset = i % r
        if r > 1 or offset:
            # TODO(synk): dilation rate > 1 makes the reference PyTorch code fail
            # with a broadcast error on the final `+=`; mirror that restriction.
            raise ValueError("dilation > 1 is shape-inconsistent in the reference")
        group_specs.append((hmin, g, s))

    if not group_specs:
        return jnp.zeros_like(q)

    HD = h * d
    rows = b * n
    in_item = jnp.dtype(q.dtype).itemsize

    # ----- generation-aware VMEM budget & row-tile selection -----
    try:
        vmem_cap = int(pltpu.get_tpu_info().vmem_capacity_bytes)
    except Exception:
        vmem_cap = 64 * 1024 * 1024  # conservative (v7x) default
    vmem_limit = min(vmem_cap - 4 * 1024 * 1024, 100 * 1024 * 1024)

    # resident bytes/row: 3 double-buffered inputs + double-buffered output
    # + f32 staging scratch
    bytes_per_row = HD * (6 * in_item + 2 * in_item + 4)
    budget = int(0.45 * vmem_limit)
    # per-operand block target: ~4 MiB on 128-MiB chips (v5e/v6e), ~2 MiB on v7x
    per_op_target = (4 if vmem_cap > 96 * 1024 * 1024 else 2) * 1024 * 1024
    row_cap = min(budget // bytes_per_row, per_op_target // (HD * in_item))

    # row tile must contain whole segments of every active group (and be a
    # multiple of 8 sublanes) so per-segment denominators stay in one pass.
    align = 8
    for (_, _, s) in group_specs:
        align = align * s // math.gcd(align, s)
    if align > max(row_cap, 0):
        # TODO(synk): segments too large for a VMEM-resident row block need a
        # two-pass (cross-block denominator) variant.
        raise NotImplementedError("segment length too large for VMEM row block")

    rows_pad = ((rows + align - 1) // align) * align
    n_blocks = rows_pad // align

    def pick_tr(max_mult):
        for kk in range(min(max_mult, n_blocks), 0, -1):
            if rows_pad % (kk * align) == 0:
                return kk * align
        return align

    tr = pick_tr(row_cap // align)
    if rows_pad // tr < 2 and n_blocks >= 2:
        tr = pick_tr(n_blocks // 2)  # keep >= 2 grid steps for v7x megacore

    # ----- native layout operands: (b, n, h, d) -> (b*n, h*d), no transpose ----
    def flat(x):
        x2 = x.reshape(rows, HD)
        if rows_pad != rows:
            x2 = jnp.pad(x2, ((0, rows_pad - rows), (0, 0)))
        return x2

    q2, k2, v2 = flat(q), flat(k), flat(v)

    kernel = _build_kernel(d, tuple(group_specs), tuple(zero_heads),
                           num_groups, bool(is_causal))
    spec = pl.BlockSpec((tr, HD), lambda t: (t, 0))
    out2 = pl.pallas_call(
        kernel,
        out_shape=jax.ShapeDtypeStruct((rows_pad, HD), q.dtype),
        grid_spec=pltpu.PrefetchScalarGridSpec(
            num_scalar_prefetch=0,
            grid=(rows_pad // tr,),
            in_specs=[spec, spec, spec],
            out_specs=spec,
            scratch_shapes=[pltpu.VMEM((tr, HD), jnp.float32)],
        ),
        compiler_params=pltpu.CompilerParams(
            dimension_semantics=("parallel",),
            vmem_limit_bytes=int(vmem_limit),
        ),
    )(q2, k2, v2)

    if rows_pad != rows:
        out2 = out2[:rows]
    return out2.reshape(b, n, h, d)


# --------------------------------------------------------------------------
# Pure-JAX reference (direct transcription of the PyTorch forward)
# --------------------------------------------------------------------------
def _sdpa_ref(q, k, v, is_causal):
    d = q.shape[-1]
    scores = jnp.einsum("...ld,...md->...lm", q, k) / math.sqrt(d)
    if is_causal:
        L = q.shape[-2]
        mask = jnp.tril(jnp.ones((L, L), dtype=bool))
        scores = jnp.where(mask, scores, -jnp.inf)
    p = jax.nn.softmax(scores, axis=-1)
    return jnp.einsum("...lm,...md->...ld", p, v)


def reference_forward(q, k, v, segment_lengths, dilation_rates, is_causal=False):
    b, n, h, d = q.shape
    num_groups = len(segment_lengths)
    gs = [h // num_groups] * num_groups
    for i in range(h % num_groups):
        gs[i] += 1
    out = jnp.zeros_like(q)
    for i, (g, r, s) in enumerate(zip(gs, dilation_rates, segment_lengths)):
        if n < s or g == 0:
            continue
        offset = i % r
        hmin = sum(gs[:i])
        hmax = hmin + g
        nseg = n // s
        qg = q[:, :, hmin:hmax, :].reshape(b * nseg, s, g, d)
        kg = k[:, :, hmin:hmax, :].reshape(b * nseg, s, g, d)
        vg = v[:, :, hmin:hmax, :].reshape(b * nseg, s, g, d)
        if r > 1 or offset:
            idx = jnp.arange(offset, s, r)
            qg, kg, vg = qg[:, idx], kg[:, idx], vg[:, idx]
        x = _sdpa_ref(qg, kg, vg, is_causal)
        denom = jnp.sum(x, axis=(1, 2), keepdims=True) + 1e-8
        x = x / denom
        s_r = x.shape[1]
        x = x.reshape(b, nseg * s_r, g, d)
        out = out.at[:, :, hmin:hmax, :].add(x)
    return out / num_groups


if __name__ == "__main__":
    key = jax.random.PRNGKey(0)
    b, n, h, d = 2, 16, 4, 32
    segment_lengths = [4, 8]
    dilation_rates = [1, 1]  # r > 1 is shape-inconsistent in the reference itself

    kq, kk, kv = jax.random.split(key, 3)
    q = jax.random.normal(kq, (b, n, h, d), dtype=jnp.float32)
    k = jax.random.normal(kk, (b, n, h, d), dtype=jnp.float32)
    v = jax.random.normal(kv, (b, n, h, d), dtype=jnp.float32)

    for causal in (False, True):
        out = simple_improved_dilated_attention(q, k, v, segment_lengths,
                                                dilation_rates, is_causal=causal)
        out = jax.block_until_ready(out)
        ref = reference_forward(q, k, v, segment_lengths, dilation_rates,
                                is_causal=causal)
        np.testing.assert_allclose(np.asarray(out), np.asarray(ref),
                                   rtol=5e-4, atol=5e-4)
    print("KERNEL_OK")
</pallas_src>

<mosaic_0001>
module attributes {stable_mosaic.version = 11 : i64} {
  func.func @kernel(%arg0: i32, %arg1: memref<16x128xf32, #tpu.memory_space<vmem>>, %arg2: memref<16x128xf32, #tpu.memory_space<vmem>>, %arg3: memref<16x128xf32, #tpu.memory_space<vmem>>, %arg4: memref<16x128xf32, #tpu.memory_space<vmem>>, %arg5: memref<16x128xf32, #tpu.memory_space<vmem>>) attributes {dimension_semantics = [#tpu.dimension_semantics<parallel>], iteration_bounds = array<i64: 2>, scalar_prefetch = 0 : i64, scratch_operands = 1 : i64, tpu.core_type = #tpu.core_type<tc>, window_params = [{transform_indices = @transform_0, window_bounds = array<i64: 16, 128>}, {transform_indices = @transform_1, window_bounds = array<i64: 16, 128>}, {transform_indices = @transform_2, window_bounds = array<i64: 16, 128>}, {transform_indices = @transform_3, window_bounds = array<i64: 16, 128>}]} {
    %c0 = arith.constant 0 : index
    %c0_0 = arith.constant 0 : index
    %0 = vector.load %arg1[%c0, %c0_0] : memref<16x128xf32, #tpu.memory_space<vmem>>, vector<16x32xf32>
    %c0_1 = arith.constant 0 : index
    %c32 = arith.constant 32 : index
    %1 = vector.load %arg1[%c0_1, %c32] : memref<16x128xf32, #tpu.memory_space<vmem>>, vector<16x32xf32>
    %c0_2 = arith.constant 0 : index
    %c0_3 = arith.constant 0 : index
    %2 = vector.load %arg2[%c0_2, %c0_3] : memref<16x128xf32, #tpu.memory_space<vmem>>, vector<16x32xf32>
    %c0_4 = arith.constant 0 : index
    %c32_5 = arith.constant 32 : index
    %3 = vector.load %arg2[%c0_4, %c32_5] : memref<16x128xf32, #tpu.memory_space<vmem>>, vector<16x32xf32>
    %c0_6 = arith.constant 0 : index
    %c0_7 = arith.constant 0 : index
    %4 = vector.load %arg3[%c0_6, %c0_7] : memref<16x128xf32, #tpu.memory_space<vmem>>, vector<16x32xf32>
    %c0_8 = arith.constant 0 : index
    %c32_9 = arith.constant 32 : index
    %5 = vector.load %arg3[%c0_8, %c32_9] : memref<16x128xf32, #tpu.memory_space<vmem>>, vector<16x32xf32>
    %6 = arith.mulf %0, %2 : vector<16x32xf32>
    %cst = arith.constant dense<0.000000e+00> : vector<16xf32>
    %7 = vector.multi_reduction <add>, %6, %cst [1] : vector<16x32xf32> to vector<16xf32>
    %8 = vector.shape_cast %7 : vector<16xf32> to vector<16x1xf32>
    %cst_10 = arith.constant 0.176776692 : f32
    %9 = vector.broadcast %cst_10 : f32 to vector<16x1xf32>
    %10 = arith.mulf %8, %9 : vector<16x1xf32>
    %11 = arith.mulf %0, %3 : vector<16x32xf32>
    %cst_11 = arith.constant dense<0.000000e+00> : vector<16xf32>
    %12 = vector.multi_reduction <add>, %11, %cst_11 [1] : vector<16x32xf32> to vector<16xf32>
    %13 = vector.shape_cast %12 : vector<16xf32> to vector<16x1xf32>
    %cst_12 = arith.constant 0.176776692 : f32
    %14 = vector.broadcast %cst_12 : f32 to vector<16x1xf32>
    %15 = arith.mulf %13, %14 : vector<16x1xf32>
    %16 = arith.maximumf %10, %15 : vector<16x1xf32>
    %17 = arith.subf %10, %16 : vector<16x1xf32>
    %18 = math.exp %17 : vector<16x1xf32>
    %19 = arith.subf %15, %16 : vector<16x1xf32>
    %20 = math.exp %19 : vector<16x1xf32>
    %21 = arith.addf %18, %20 : vector<16x1xf32>
    %22 = vector.broadcast %18 : vector<16x1xf32> to vector<16x32xf32>
    %23 = arith.mulf %22, %4 : vector<16x32xf32>
    %24 = vector.broadcast %20 : vector<16x1xf32> to vector<16x32xf32>
    %25 = arith.mulf %24, %5 : vector<16x32xf32>
    %26 = arith.addf %23, %25 : vector<16x32xf32>
    %27 = tpu.reciprocal %21 : vector<16x1xf32> -> vector<16x1xf32>
    %28 = vector.broadcast %27 : vector<16x1xf32> to vector<16x32xf32>
    %29 = arith.mulf %26, %28 : vector<16x32xf32>
    %c0_13 = arith.constant 0 : index
    %c0_14 = arith.constant 0 : index
    %30 = vector.load %arg5[%c0_13, %c0_14] : memref<16x128xf32, #tpu.memory_space<vmem>>, vector<16x32xf32>
    tpu.vector_store %arg5[%c0_13, %c0_14], %29 {strides = array<i32>} : memref<16x128xf32, #tpu.memory_space<vmem>>, vector<16x32xf32>,
    %31 = arith.mulf %1, %2 : vector<16x32xf32>
    %cst_15 = arith.constant dense<0.000000e+00> : vector<16xf32>
    %32 = vector.multi_reduction <add>, %31, %cst_15 [1] : vector<16x32xf32> to vector<16xf32>
    %33 = vector.shape_cast %32 : vector<16xf32> to vector<16x1xf32>
    %cst_16 = arith.constant 0.176776692 : f32
    %34 = vector.broadcast %cst_16 : f32 to vector<16x1xf32>
    %35 = arith.mulf %33, %34 : vector<16x1xf32>
    %36 = arith.mulf %1, %3 : vector<16x32xf32>
    %cst_17 = arith.constant dense<0.000000e+00> : vector<16xf32>
    %37 = vector.multi_reduction <add>, %36, %cst_17 [1] : vector<16x32xf32> to vector<16xf32>
    %38 = vector.shape_cast %37 : vector<16xf32> to vector<16x1xf32>
    %cst_18 = arith.constant 0.176776692 : f32
    %39 = vector.broadcast %cst_18 : f32 to vector<16x1xf32>
    %40 = arith.mulf %38, %39 : vector<16x1xf32>
    %41 = arith.maximumf %35, %40 : vector<16x1xf32>
    %42 = arith.subf %35, %41 : vector<16x1xf32>
    %43 = math.exp %42 : vector<16x1xf32>
    %44 = arith.subf %40, %41 : vector<16x1xf32>
    %45 = math.exp %44 : vector<16x1xf32>
    %46 = arith.addf %43, %45 : vector<16x1xf32>
    %47 = vector.broadcast %43 : vector<16x1xf32> to vector<16x32xf32>
    %48 = arith.mulf %47, %4 : vector<16x32xf32>
    %49 = vector.broadcast %45 : vector<16x1xf32> to vector<16x32xf32>
    %50 = arith.mulf %49, %5 : vector<16x32xf32>
    %51 = arith.addf %48, %50 : vector<16x32xf32>
    %52 = tpu.reciprocal %46 : vector<16x1xf32> -> vector<16x1xf32>
    %53 = vector.broadcast %52 : vector<16x1xf32> to vector<16x32xf32>
    %54 = arith.mulf %51, %53 : vector<16x32xf32>
    %c0_19 = arith.constant 0 : index
    %c32_20 = arith.constant 32 : index
    %55 = vector.load %arg5[%c0_19, %c32_20] : memref<16x128xf32, #tpu.memory_space<vmem>>, vector<16x32xf32>
    tpu.vector_store %arg5[%c0_19, %c32_20], %54 {strides = array<i32>} : memref<16x128xf32, #tpu.memory_space<vmem>>, vector<16x32xf32>,
    %c0_21 = arith.constant 0 : index
    %c0_22 = arith.constant 0 : index
    %56 = vector.load %arg5[%c0_21, %c0_22] : memref<16x128xf32, #tpu.memory_space<vmem>>, vector<16x32xf32>
    %c0_23 = arith.constant 0 : index
    %c32_24 = arith.constant 32 : index
    %57 = vector.load %arg5[%c0_23, %c32_24] : memref<16x128xf32, #tpu.memory_space<vmem>>, vector<16x32xf32>
    %58 = arith.addf %56, %57 : vector<16x32xf32>
    %59 = tpu.iota {dimensions = array<i32: 0>} : vector<16x4xi32>
    %60 = tpu.iota {dimensions = array<i32: 1>} : vector<16x4xi32>
    %c4_i32 = arith.constant 4 : i32
    %61 = vector.broadcast %c4_i32 : i32 to vector<16x4xi32>
    %62 = arith.muli %60, %61 : vector<16x4xi32>
    %63 = arith.cmpi sge, %59, %62 : vector<16x4xi32>
    %c4_i32_25 = arith.constant 4 : i32
    %64 = vector.broadcast %c4_i32_25 : i32 to vector<16x4xi32>
    %65 = arith.addi %62, %64 : vector<16x4xi32>
    %66 = arith.cmpi slt, %59, %65 : vector<16x4xi32>
    %67 = arith.andi %63, %66 : vector<16x4xi1>
    %68 = arith.extui %67 : vector<16x4xi1> to vector<16x4xi32>
    %69 = arith.sitofp %68 : vector<16x4xi32> to vector<16x4xf32>
    %70 = tpu.iota {dimensions = array<i32: 1>} : vector<4x16xi32>
    %71 = tpu.iota {dimensions = array<i32: 0>} : vector<4x16xi32>
    %c4_i32_26 = arith.constant 4 : i32
    %72 = vector.broadcast %c4_i32_26 : i32 to vector<4x16xi32>
    %73 = arith.muli %71, %72 : vector<4x16xi32>
    %74 = arith.cmpi sge, %70, %73 : vector<4x16xi32>
    %c4_i32_27 = arith.constant 4 : i32
    %75 = vector.broadcast %c4_i32_27 : i32 to vector<4x16xi32>
    %76 = arith.addi %73, %75 : vector<4x16xi32>
    %77 = arith.cmpi slt, %70, %76 : vector<4x16xi32>
    %78 = arith.andi %74, %77 : vector<4x16xi1>
    %79 = arith.extui %78 : vector<4x16xi1> to vector<4x16xi32>
    %80 = arith.sitofp %79 : vector<4x16xi32> to vector<4x16xf32>
    %cst_28 = arith.constant dense<0.000000e+00> : vector<4x32xf32>
    %81 = tpu.matmul %80, %58, %cst_28 {dimension_numbers = #tpu.dot_dimension_numbers<[1], [0], [0], [1], [0, 0, 1, 1], [], []>} : vector<4x16xf32>, vector<16x32xf32>, vector<4x32xf32> -> vector<4x32xf32>
    %cst_29 = arith.constant 9.99999993E-9 : f32
    %82 = vector.broadcast %cst_29 : f32 to vector<4x32xf32>
    %83 = arith.addf %81, %82 : vector<4x32xf32>
    %84 = tpu.reciprocal %83 : vector<4x32xf32> -> vector<4x32xf32>
    %cst_30 = arith.constant 5.000000e-01 : f32
    %85 = vector.broadcast %cst_30 : f32 to vector<4x32xf32>
    %86 = arith.mulf %84, %85 : vector<4x32xf32>
    %cst_31 = arith.constant dense<0.000000e+00> : vector<16x32xf32>
    %87 = tpu.matmul %69, %86, %cst_31 {dimension_numbers = #tpu.dot_dimension_numbers<[1], [0], [0], [1], [0, 0, 1, 1], [], []>} : vector<16x4xf32>, vector<4x32xf32>, vector<16x32xf32> -> vector<16x32xf32>
    %c0_32 = arith.constant 0 : index
    %c0_33 = arith.constant 0 : index
    %88 = vector.load %arg5[%c0_32, %c0_33] : memref<16x128xf32, #tpu.memory_space<vmem>>, vector<16x32xf32>
    %89 = arith.mulf %88, %87 : vector<16x32xf32>
    %c0_34 = arith.constant 0 : index
    %c0_35 = arith.constant 0 : index
    %90 = vector.load %arg4[%c0_34, %c0_35] : memref<16x128xf32, #tpu.memory_space<vmem>>, vector<16x32xf32>
    tpu.vector_store %arg4[%c0_34, %c0_35], %89 {strides = array<i32>} : memref<16x128xf32, #tpu.memory_space<vmem>>, vector<16x32xf32>,
    %c0_36 = arith.constant 0 : index
    %c32_37 = arith.constant 32 : index
    %91 = vector.load %arg5[%c0_36, %c32_37] : memref<16x128xf32, #tpu.memory_space<vmem>>, vector<16x32xf32>
    %92 = arith.mulf %91, %87 : vector<16x32xf32>
    %c0_38 = arith.constant 0 : index
    %c32_39 = arith.constant 32 : index
    %93 = vector.load %arg4[%c0_38, %c32_39] : memref<16x128xf32, #tpu.memory_space<vmem>>, vector<16x32xf32>
    tpu.vector_store %arg4[%c0_38, %c32_39], %92 {strides = array<i32>} : memref<16x128xf32, #tpu.memory_space<vmem>>, vector<16x32xf32>,
    %c0_40 = arith.constant 0 : index
    %c64 = arith.constant 64 : index
    %94 = vector.load %arg1[%c0_40, %c64] : memref<16x128xf32, #tpu.memory_space<vmem>>, vector<16x32xf32>
    %c0_41 = arith.constant 0 : index
    %c96 = arith.constant 96 : index
    %95 = vector.load %arg1[%c0_41, %c96] : memref<16x128xf32, #tpu.memory_space<vmem>>, vector<16x32xf32>
    %c0_42 = arith.constant 0 : index
    %c64_43 = arith.constant 64 : index
    %96 = vector.load %arg2[%c0_42, %c64_43] : memref<16x128xf32, #tpu.memory_space<vmem>>, vector<16x32xf32>
    %c0_44 = arith.constant 0 : index
    %c96_45 = arith.constant 96 : index
    %97 = vector.load %arg2[%c0_44, %c96_45] : memref<16x128xf32, #tpu.memory_space<vmem>>, vector<16x32xf32>
    %c0_46 = arith.constant 0 : index
    %c64_47 = arith.constant 64 : index
    %98 = vector.load %arg3[%c0_46, %c64_47] : memref<16x128xf32, #tpu.memory_space<vmem>>, vector<16x32xf32>
    %c0_48 = arith.constant 0 : index
    %c96_49 = arith.constant 96 : index
    %99 = vector.load %arg3[%c0_48, %c96_49] : memref<16x128xf32, #tpu.memory_space<vmem>>, vector<16x32xf32>
    %100 = arith.mulf %94, %96 : vector<16x32xf32>
    %cst_50 = arith.constant dense<0.000000e+00> : vector<16xf32>
    %101 = vector.multi_reduction <add>, %100, %cst_50 [1] : vector<16x32xf32> to vector<16xf32>
    %102 = vector.shape_cast %101 : vector<16xf32> to vector<16x1xf32>
    %cst_51 = arith.constant 0.176776692 : f32
    %103 = vector.broadcast %cst_51 : f32 to vector<16x1xf32>
    %104 = arith.mulf %102, %103 : vector<16x1xf32>
    %105 = arith.mulf %94, %97 : vector<16x32xf32>
    %cst_52 = arith.constant dense<0.000000e+00> : vector<16xf32>
    %106 = vector.multi_reduction <add>, %105, %cst_52 [1] : vector<16x32xf32> to vector<16xf32>
    %107 = vector.shape_cast %106 : vector<16xf32> to vector<16x1xf32>
    %cst_53 = arith.constant 0.176776692 : f32
    %108 = vector.broadcast %cst_53 : f32 to vector<16x1xf32>
    %109 = arith.mulf %107, %108 : vector<16x1xf32>
    %110 = arith.maximumf %104, %109 : vector<16x1xf32>
    %111 = arith.subf %104, %110 : vector<16x1xf32>
    %112 = math.exp %111 : vector<16x1xf32>
    %113 = arith.subf %109, %110 : vector<16x1xf32>
    %114 = math.exp %113 : vector<16x1xf32>
    %115 = arith.addf %112, %114 : vector<16x1xf32>
    %116 = vector.broadcast %112 : vector<16x1xf32> to vector<16x32xf32>
    %117 = arith.mulf %116, %98 : vector<16x32xf32>
    %118 = vector.broadcast %114 : vector<16x1xf32> to vector<16x32xf32>
    %119 = arith.mulf %118, %99 : vector<16x32xf32>
    %120 = arith.addf %117, %119 : vector<16x32xf32>
    %121 = tpu.reciprocal %115 : vector<16x1xf32> -> vector<16x1xf32>
    %122 = vector.broadcast %121 : vector<16x1xf32> to vector<16x32xf32>
    %123 = arith.mulf %120, %122 : vector<16x32xf32>
    %c0_54 = arith.constant 0 : index
    %c64_55 = arith.constant 64 : index
    %124 = vector.load %arg5[%c0_54, %c64_55] : memref<16x128xf32, #tpu.memory_space<vmem>>, vector<16x32xf32>
    tpu.vector_store %arg5[%c0_54, %c64_55], %123 {strides = array<i32>} : memref<16x128xf32, #tpu.memory_space<vmem>>, vector<16x32xf32>,
    %125 = arith.mulf %95, %96 : vector<16x32xf32>
    %cst_56 = arith.constant dense<0.000000e+00> : vector<16xf32>
    %126 = vector.multi_reduction <add>, %125, %cst_56 [1] : vector<16x32xf32> to vector<16xf32>
    %127 = vector.shape_cast %126 : vector<16xf32> to vector<16x1xf32>
    %cst_57 = arith.constant 0.176776692 : f32
    %128 = vector.broadcast %cst_57 : f32 to vector<16x1xf32>
    %129 = arith.mulf %127, %128 : vector<16x1xf32>
    %130 = arith.mulf %95, %97 : vector<16x32xf32>
    %cst_58 = arith.constant dense<0.000000e+00> : vector<16xf32>
    %131 = vector.multi_reduction <add>, %130, %cst_58 [1] : vector<16x32xf32> to vector<16xf32>
    %132 = vector.shape_cast %131 : vector<16xf32> to vector<16x1xf32>
    %cst_59 = arith.constant 0.176776692 : f32
    %133 = vector.broadcast %cst_59 : f32 to vector<16x1xf32>
    %134 = arith.mulf %132, %133 : vector<16x1xf32>
    %135 = arith.maximumf %129, %134 : vector<16x1xf32>
    %136 = arith.subf %129, %135 : vector<16x1xf32>
    %137 = math.exp %136 : vector<16x1xf32>
    %138 = arith.subf %134, %135 : vector<16x1xf32>
    %139 = math.exp %138 : vector<16x1xf32>
    %140 = arith.addf %137, %139 : vector<16x1xf32>
    %141 = vector.broadcast %137 : vector<16x1xf32> to vector<16x32xf32>
    %142 = arith.mulf %141, %98 : vector<16x32xf32>
    %143 = vector.broadcast %139 : vector<16x1xf32> to vector<16x32xf32>
    %144 = arith.mulf %143, %99 : vector<16x32xf32>
    %145 = arith.addf %142, %144 : vector<16x32xf32>
    %146 = tpu.reciprocal %140 : vector<16x1xf32> -> vector<16x1xf32>
    %147 = vector.broadcast %146 : vector<16x1xf32> to vector<16x32xf32>
    %148 = arith.mulf %145, %147 : vector<16x32xf32>
    %c0_60 = arith.constant 0 : index
    %c96_61 = arith.constant 96 : index
    %149 = vector.load %arg5[%c0_60, %c96_61] : memref<16x128xf32, #tpu.memory_space<vmem>>, vector<16x32xf32>
    tpu.vector_store %arg5[%c0_60, %c96_61], %148 {strides = array<i32>} : memref<16x128xf32, #tpu.memory_space<vmem>>, vector<16x32xf32>,
    %c0_62 = arith.constant 0 : index
    %c64_63 = arith.constant 64 : index
    %150 = vector.load %arg5[%c0_62, %c64_63] : memref<16x128xf32, #tpu.memory_space<vmem>>, vector<16x32xf32>
    %c0_64 = arith.constant 0 : index
    %c96_65 = arith.constant 96 : index
    %151 = vector.load %arg5[%c0_64, %c96_65] : memref<16x128xf32, #tpu.memory_space<vmem>>, vector<16x32xf32>
    %152 = arith.addf %150, %151 : vector<16x32xf32>
    %153 = tpu.iota {dimensions = array<i32: 0>} : vector<16x2xi32>
    %154 = tpu.iota {dimensions = array<i32: 1>} : vector<16x2xi32>
    %c8_i32 = arith.constant 8 : i32
    %155 = vector.broadcast %c8_i32 : i32 to vector<16x2xi32>
    %156 = arith.muli %154, %155 : vector<16x2xi32>
    %157 = arith.cmpi sge, %153, %156 : vector<16x2xi32>
    %c8_i32_66 = arith.constant 8 : i32
    %158 = vector.broadcast %c8_i32_66 : i32 to vector<16x2xi32>
    %159 = arith.addi %156, %158 : vector<16x2xi32>
    %160 = arith.cmpi slt, %153, %159 : vector<16x2xi32>
    %161 = arith.andi %157, %160 : vector<16x2xi1>
    %162 = arith.extui %161 : vector<16x2xi1> to vector<16x2xi32>
    %163 = arith.sitofp %162 : vector<16x2xi32> to vector<16x2xf32>
    %164 = tpu.iota {dimensions = array<i32: 1>} : vector<2x16xi32>
    %165 = tpu.iota {dimensions = array<i32: 0>} : vector<2x16xi32>
    %c8_i32_67 = arith.constant 8 : i32
    %166 = vector.broadcast %c8_i32_67 : i32 to vector<2x16xi32>
    %167 = arith.muli %165, %166 : vector<2x16xi32>
    %168 = arith.cmpi sge, %164, %167 : vector<2x16xi32>
    %c8_i32_68 = arith.constant 8 : i32
    %169 = vector.broadcast %c8_i32_68 : i32 to vector<2x16xi32>
    %170 = arith.addi %167, %169 : vector<2x16xi32>
    %171 = arith.cmpi slt, %164, %170 : vector<2x16xi32>
    %172 = arith.andi %168, %171 : vector<2x16xi1>
    %173 = arith.extui %172 : vector<2x16xi1> to vector<2x16xi32>
    %174 = arith.sitofp %173 : vector<2x16xi32> to vector<2x16xf32>
    %cst_69 = arith.constant dense<0.000000e+00> : vector<2x32xf32>
    %175 = tpu.matmul %174, %152, %cst_69 {dimension_numbers = #tpu.dot_dimension_numbers<[1], [0], [0], [1], [0, 0, 1, 1], [], []>} : vector<2x16xf32>, vector<16x32xf32>, vector<2x32xf32> -> vector<2x32xf32>
    %cst_70 = arith.constant 9.99999993E-9 : f32
    %176 = vector.broadcast %cst_70 : f32 to vector<2x32xf32>
    %177 = arith.addf %175, %176 : vector<2x32xf32>
    %178 = tpu.reciprocal %177 : vector<2x32xf32> -> vector<2x32xf32>
    %cst_71 = arith.constant 5.000000e-01 : f32
    %179 = vector.broadcast %cst_71 : f32 to vector<2x32xf32>
    %180 = arith.mulf %178, %179 : vector<2x32xf32>
    %cst_72 = arith.constant dense<0.000000e+00> : vector<16x32xf32>
    %181 = tpu.matmul %163, %180, %cst_72 {dimension_numbers = #tpu.dot_dimension_numbers<[1], [0], [0], [1], [0, 0, 1, 1], [], []>} : vector<16x2xf32>, vector<2x32xf32>, vector<16x32xf32> -> vector<16x32xf32>
    %c0_73 = arith.constant 0 : index
    %c64_74 = arith.constant 64 : index
    %182 = vector.load %arg5[%c0_73, %c64_74] : memref<16x128xf32, #tpu.memory_space<vmem>>, vector<16x32xf32>
    %183 = arith.mulf %182, %181 : vector<16x32xf32>
    %c0_75 = arith.constant 0 : index
    %c64_76 = arith.constant 64 : index
    %184 = vector.load %arg4[%c0_75, %c64_76] : memref<16x128xf32, #tpu.memory_space<vmem>>, vector<16x32xf32>
    tpu.vector_store %arg4[%c0_75, %c64_76], %183 {strides = array<i32>} : memref<16x128xf32, #tpu.memory_space<vmem>>, vector<16x32xf32>,
    %c0_77 = arith.constant 0 : index
    %c96_78 = arith.constant 96 : index
    %185 = vector.load %arg5[%c0_77, %c96_78] : memref<16x128xf32, #tpu.memory_space<vmem>>, vector<16x32xf32>
    %186 = arith.mulf %185, %181 : vector<16x32xf32>
    %c0_79 = arith.constant 0 : index
    %c96_80 = arith.constant 96 : index
    %187 = vector.load %arg4[%c0_79, %c96_80] : memref<16x128xf32, #tpu.memory_space<vmem>>, vector<16x32xf32>
    tpu.vector_store %arg4[%c0_79, %c96_80], %186 {strides = array<i32>} : memref<16x128xf32, #tpu.memory_space<vmem>>, vector<16x32xf32>,
    return
  }
  func.func @transform_0(%arg0: i32) -> (i32, i32) {
    %c0_i32 = arith.constant 0 : i32
    %c0_i32_0 = arith.constant 0 : i32
    return %arg0, %c0_i32 : i32, i32
  }
  func.func @transform_1(%arg0: i32) -> (i32, i32) {
    %c0_i32 = arith.constant 0 : i32
    %c0_i32_0 = arith.constant 0 : i32
    return %arg0, %c0_i32 : i32, i32
  }
  func.func @transform_2(%arg0: i32) -> (i32, i32) {
    %c0_i32 = arith.constant 0 : i32
    %c0_i32_0 = arith.constant 0 : i32
    return %arg0, %c0_i32 : i32, i32
  }
  func.func @transform_3(%arg0: i32) -> (i32, i32) {
    %c0_i32 = arith.constant 0 : i32
    %c0_i32_0 = arith.constant 0 : i32
    return %arg0, %c0_i32 : i32, i32
  }
}

</mosaic_0001>

<llo_original>
// kernel: tpu_custom_call.1
$region0: #{tpu_custom_call.1}
  #allocation0 [shape = 'u32[]', space=smem, size = 0x4, offset = 0x4, fixed_abs, tag = 'smem constant byte address 0x4 - core index']
  #allocation1 [shape = 'u32[144,128]{1,0:T(1,128)}', space=vmem, size = 0x12000, scoped, tag = 'internal scratch']
  #allocation2 [shape = 'f32[16,128]{1,0:T(8,128)}', space=vmem, size = 0x2000, scoped, tag = 'scratch operand']
  %s0 = inlined_call_operand.hbm [shape: f32[32,128], index: 0, kind: input, shape index: {}]
  %s1 = inlined_call_operand.hbm [shape: f32[32,128], index: 1, kind: input, shape index: {}]
  %s2 = inlined_call_operand.hbm [shape: f32[32,128], index: 2, kind: input, shape index: {}]
  %s3 = inlined_call_operand.hbm [shape: f32[32,128], index: 3, kind: output, shape index: {}]
  %s4 = sld [smem:[#allocation0]]
  $region57: #{tpu_custom_call.1} parent=0
    _
  %s6 = ssub.s32 1, %s4
  %s7 = scalar_select 0, %s6, %s4
  $region1: #{tpu_custom_call.1} parent=0
    #allocation3 [shape = 'u8[16384]{0}', space=vmem, size = 0x4000, scoped, tag = 'input window, operand 0']
    #allocation4 [shape = 's32[2]{0}', space=sflag, size = 0x8, scoped, tag = 'scoped memory for tpu_custom_call.1']
    #allocation5 [shape = 's32[2]{0}', space=sflag, size = 0x8, scoped, tag = 'scoped memory for tpu_custom_call.1']
    #allocation6 [shape = 'u8[16384]{0}', space=vmem, size = 0x4000, scoped, tag = 'input window, operand 1']
    #allocation7 [shape = 's32[2]{0}', space=sflag, size = 0x8, scoped, tag = 'scoped memory for tpu_custom_call.1']
    #allocation8 [shape = 'u8[16384]{0}', space=vmem, size = 0x4000, scoped, tag = 'input window, operand 2']
    #allocation9 [shape = 'u8[16384]{0}', space=vmem, size = 0x4000, scoped, tag = 'output window, operand 0']
    %8 = vsyncpa [#allocation4], 0
    %s9 = scalar_lea.sflag [#allocation4], 1
    %10 = vsyncpa %s9, 0
    %11 = vsyncpa [#allocation7], 0
    %s12 = scalar_lea.sflag [#allocation7], 1
    %13 = vsyncpa %s12, 0
    %14 = vsyncpa [#allocation5], 0
    %s15 = scalar_lea.sflag [#allocation5], 1
    %16 = vsyncpa %s15, 0
    loop: start=0, step=1, limit=4
    $region2: #{tpu_custom_call.1} parent=1 // loop_pre_header
      _
    $region3: #{tpu_custom_call.1} parent=1 // loop_header
      %s18 = sphi 0, %s22
      %p19 = scmp.ge.s32.totalorder %s18, 4
      %s28 = sphi 0, %s30
      %s31 = sphi 0, %s28
      %s32 = sphi 0, %s31
      %s48 = sphi 0, %s32
      %s54 = sphi 0, %s56
      %s57 = sphi 0, %s54
      %s58 = sphi 0, %s57
      %s74 = sphi 0, %s58
      %s80 = sphi 0, %s82
      %s83 = sphi 0, %s80
      %s84 = sphi 0, %s83
      %s100 = sphi 0, %s84
      %s106 = sphi 0, %s108
      %s109 = sphi 0, %s106
      %s110 = sphi 0, %s109
      %s126 = sphi 0, %s110
    $region4: #{tpu_custom_call.1} parent=1 // loop_header_branch
      %21 = sbr.rel (%p19) target = $region8
    $region5: #{tpu_custom_call.1} parent=1 // loop_body
      %s23 = ssub.s32 %s18, 1
      %s24 = ssub.s32 %s18, 2
      %s25 = sadd.s32 %s18, 1
      %s26 = ssub.s32 %s18, %s25
      %p27 = scmp.eq.s32.totalorder %s26, 0
      %s29 = sadd.s32 %s28, 1
      %s30 = scalar_select %p27, %s28, %s29
      %p33 = pneg %p27
      %p34 = scmp.eq.s32.totalorder %s18, 1
      %p35 = por %p33, %p34
      %p36 = scmp.ne.s32.totalorder %s28, %s31
      %p37 = scmp.eq.s32.totalorder %s18, 0
      %p38 = por %p36, %p37
      %p39 = scmp.ne.s32.totalorder %s28, %s31
      %p40 = scmp.eq.s32.totalorder %s23, 1
      %p41 = por %p39, %p40
      %p42 = scmp.ne.s32.totalorder %s31, %s32
      %p43 = scmp.eq.s32.totalorder %s23, 0
      %p44 = por %p42, %p43
      %p45 = scmp.ne.s32.totalorder %s31, %s32
      %p46 = scmp.eq.s32.totalorder %s24, 1
      %p47 = por %p45, %p46
      %p49 = scmp.ne.s32.totalorder %s32, %s48
      %p50 = scmp.eq.s32.totalorder %s24, 0
      %p51 = por %p49, %p50
      %s52 = ssub.s32 %s18, %s25
      %p53 = scmp.eq.s32.totalorder %s52, 0
      %s55 = sadd.s32 %s54, 1
      %s56 = scalar_select %p53, %s54, %s55
      %p59 = pneg %p53
      %p60 = scmp.eq.s32.totalorder %s18, 1
      %p61 = por %p59, %p60
      %p62 = scmp.ne.s32.totalorder %s54, %s57
      %p63 = scmp.eq.s32.totalorder %s18, 0
      %p64 = por %p62, %p63
      %p65 = scmp.ne.s32.totalorder %s54, %s57
      %p66 = scmp.eq.s32.totalorder %s23, 1
      %p67 = por %p65, %p66
      %p68 = scmp.ne.s32.totalorder %s57, %s58
      %p69 = scmp.eq.s32.totalorder %s23, 0
      %p70 = por %p68, %p69
      %p71 = scmp.ne.s32.totalorder %s57, %s58
      %p72 = scmp.eq.s32.totalorder %s24, 1
      %p73 = por %p71, %p72
      %p75 = scmp.ne.s32.totalorder %s58, %s74
      %p76 = scmp.eq.s32.totalorder %s24, 0
      %p77 = por %p75, %p76
      %s78 = ssub.s32 %s18, %s25
      %p79 = scmp.eq.s32.totalorder %s78, 0
      %s81 = sadd.s32 %s80, 1
      %s82 = scalar_select %p79, %s80, %s81
      %p85 = pneg %p79
      %p86 = scmp.eq.s32.totalorder %s18, 1
      %p87 = por %p85, %p86
      %p88 = scmp.ne.s32.totalorder %s80, %s83
      %p89 = scmp.eq.s32.totalorder %s18, 0
      %p90 = por %p88, %p89
      %p91 = scmp.ne.s32.totalorder %s80, %s83
      %p92 = scmp.eq.s32.totalorder %s23, 1
      %p93 = por %p91, %p92
      %p94 = scmp.ne.s32.totalorder %s83, %s84
      %p95 = scmp.eq.s32.totalorder %s23, 0
      %p96 = por %p94, %p95
      %p97 = scmp.ne.s32.totalorder %s83, %s84
      %p98 = scmp.eq.s32.totalorder %s24, 1
      %p99 = por %p97, %p98
      %p101 = scmp.ne.s32.totalorder %s84, %s100
      %p102 = scmp.eq.s32.totalorder %s24, 0
      %p103 = por %p101, %p102
      %s104 = ssub.s32 %s18, %s25
      %p105 = scmp.eq.s32.totalorder %s104, 0
      %s107 = sadd.s32 %s106, 1
      %s108 = scalar_select %p105, %s106, %s107
      %p111 = pneg %p105
      %p112 = scmp.eq.s32.totalorder %s18, 1
      %p113 = por %p111, %p112
      %p114 = scmp.ne.s32.totalorder %s106, %s109
      %p115 = scmp.eq.s32.totalorder %s18, 0
      %p116 = por %p114, %p115
      %p117 = scmp.ne.s32.totalorder %s106, %s109
      %p118 = scmp.eq.s32.totalorder %s23, 1
      %p119 = por %p117, %p118
      %p120 = scmp.ne.s32.totalorder %s109, %s110
      %p121 = scmp.eq.s32.totalorder %s23, 0
      %p122 = por %p120, %p121
      %p123 = scmp.ne.s32.totalorder %s109, %s110
      %p124 = scmp.eq.s32.totalorder %s24, 1
      %p125 = por %p123, %p124
      %p127 = scmp.ne.s32.totalorder %s110, %s126
      %p128 = scmp.eq.s32.totalorder %s24, 0
      %p129 = por %p127, %p128
      %p130 = scmp.le.s32.totalorder 1, %s18
      %p131 = scmp.lt.s32.totalorder %s18, 3
      %p132 = pnand %p130, %p131
      %p133 = pneg %p132
      // Predicated region
      $region9: #{tpu_custom_call.1} parent=5 // pred_check
        _
      $region10: #{tpu_custom_call.1} parent=5 // pred_check_branch
        %135 = sbr.rel (%p132) target = $region12
      $region11: #{tpu_custom_call.1} parent=5 // pred_region
        %s136 = ssub.s32 %s18, 1
      $region12: #{tpu_custom_call.1} parent=5 // pred_fallthru
        _
      %p137 = scmp.lt.s32.totalorder %s18, 2
      // Predicated region
      $region13: #{tpu_custom_call.1} parent=5 // pred_check
        %p138 = pneg %p137
      $region14: #{tpu_custom_call.1} parent=5 // pred_check_branch
        %140 = sbr.rel (%p138) target = $region16
      $region15: #{tpu_custom_call.1} parent=5 // pred_region
        // Predicated region
        $region17: #{tpu_custom_call.1} parent=15 // pred_check
          %p141 = pneg %p38
        $region18: #{tpu_custom_call.1} parent=15 // pred_check_branch
          %143 = sbr.rel (%p141) target = $region20
        $region19: #{tpu_custom_call.1} parent=15 // pred_region
          %s144 = sand.u32 %s28, 1
          %s145 = scalar_lea.sflag [#allocation4], %s144
          %s146 = sand.u32 %s28, 1
          %s147 = smul.addr %s146, 16
          %s148 = scalar_lea.vmem [#allocation3], %s147
          %s149 = smul.u32 2, %s18
          %s151 = ssub.s32 256, 256
          %152 = vsyncadd %s145, %s151
          %s153 = smul.addr %s149, 128
          %s154 = scalar_lea.hbm %s0, %s153
          %s155 = sshll.u32 %s148, 4
          %s156 = int_to_ptr.vmem [resolvable:$true] %s155
          %161 = dma.hbm_to_vmem [thread:$0]  %s154, 256, %s156, %s145, 128, 128, 8
        $region20: #{tpu_custom_call.1} parent=15 // pred_fallthru
          _
        // Predicated region
        $region21: #{tpu_custom_call.1} parent=15 // pred_check
          %p162 = pneg %p64
        $region22: #{tpu_custom_call.1} parent=15 // pred_check_branch
          %164 = sbr.rel (%p162) target = $region24
        $region23: #{tpu_custom_call.1} parent=15 // pred_region
          %s165 = sand.u32 %s18, 1
          %s166 = scalar_lea.sflag [#allocation7], %s165
          %s167 = sand.u32 %s54, 1
          %s168 = smul.addr %s167, 16
          %s169 = scalar_lea.vmem [#allocation6], %s168
          %s170 = smul.u32 2, %s18
          %s172 = ssub.s32 256, 256
          %173 = vsyncadd %s166, %s172
          %s174 = smul.addr %s170, 128
          %s175 = scalar_lea.hbm %s1, %s174
          %s176 = sshll.u32 %s169, 4
          %s177 = int_to_ptr.vmem [resolvable:$true] %s176
          %182 = dma.hbm_to_vmem [thread:$0]  %s175, 256, %s177, %s166, 128, 128, 8
        $region24: #{tpu_custom_call.1} parent=15 // pred_fallthru
          _
        // Predicated region
        $region25: #{tpu_custom_call.1} parent=15 // pred_check
          %p183 = pneg %p90
        $region26: #{tpu_custom_call.1} parent=15 // pred_check_branch
          %185 = sbr.rel (%p183) target = $region28
        $region27: #{tpu_custom_call.1} parent=15 // pred_region
          %s186 = sand.u32 %s18, 1
          %s187 = scalar_lea.sflag [#allocation7], %s186
          %s188 = sand.u32 %s80, 1
          %s189 = smul.addr %s188, 16
          %s190 = scalar_lea.vmem [#allocation8], %s189
          %s191 = smul.u32 2, %s18
          %s193 = ssub.s32 256, 256
          %194 = vsyncadd %s187, %s193
          %s195 = smul.addr %s191, 128
          %s196 = scalar_lea.hbm %s2, %s195
          %s197 = sshll.u32 %s190, 4
          %s198 = int_to_ptr.vmem [resolvable:$true] %s197
          %203 = dma.hbm_to_vmem [thread:$0]  %s196, 256, %s198, %s187, 128, 128, 8
        $region28: #{tpu_custom_call.1} parent=15 // pred_fallthru
          _
      $region16: #{tpu_custom_call.1} parent=5 // pred_fallthru
        _
      %p204 = scmp.le.s32.totalorder 1, %s18
      %p205 = scmp.lt.s32.totalorder %s18, 3
      %p206 = pnand %p204, %p205
      %p207 = pneg %p206
      // Predicated region
      $region29: #{tpu_custom_call.1} parent=5 // pred_check
        _
      $region30: #{tpu_custom_call.1} parent=5 // pred_check_branch
        %209 = sbr.rel (%p206) target = $region32
      $region31: #{tpu_custom_call.1} parent=5 // pred_region
        %s210 = ssub.s32 %s18, 1
        %s211 = sand.u32 %s31, 1
        %s212 = scalar_lea.sflag [#allocation4], %s211
        %s213 = sand.u32 %s31, 1
        %s214 = smul.addr %s213, 16
        %s215 = scalar_lea.vmem [#allocation3], %s214
        // Predicated region
        $region33: #{tpu_custom_call.1} parent=31 // pred_check
          %p216 = pneg %p44
        $region34: #{tpu_custom_call.1} parent=31 // pred_check_branch
          %218 = sbr.rel (%p216) target = $region36
        $region35: #{tpu_custom_call.1} parent=31 // pred_region
          %219 = dma.done %s212, 256
        $region36: #{tpu_custom_call.1} parent=31 // pred_fallthru
          _
        %s220 = sand.u32 %s23, 1
        %s221 = scalar_lea.sflag [#allocation7], %s220
        %s222 = sand.u32 %s57, 1
        %s223 = smul.addr %s222, 16
        %s224 = scalar_lea.vmem [#allocation6], %s223
        // Predicated region
        $region37: #{tpu_custom_call.1} parent=31 // pred_check
          %p225 = pneg %p70
        $region38: #{tpu_custom_call.1} parent=31 // pred_check_branch
          %227 = sbr.rel (%p225) target = $region40
        $region39: #{tpu_custom_call.1} parent=31 // pred_region
          %228 = dma.done %s221, 256
        $region40: #{tpu_custom_call.1} parent=31 // pred_fallthru
          _
        %s229 = sand.u32 %s23, 1
        %s230 = scalar_lea.sflag [#allocation7], %s229
        %s231 = sand.u32 %s83, 1
        %s232 = smul.addr %s231, 16
        %s233 = scalar_lea.vmem [#allocation8], %s232
        // Predicated region
        $region41: #{tpu_custom_call.1} parent=31 // pred_check
          %p234 = pneg %p96
        $region42: #{tpu_custom_call.1} parent=31 // pred_check_branch
          %236 = sbr.rel (%p234) target = $region44
        $region43: #{tpu_custom_call.1} parent=31 // pred_region
          %237 = dma.done %s230, 256
        $region44: #{tpu_custom_call.1} parent=31 // pred_fallthru
          _
        %s238 = sand.u32 %s31, 1
        %s239 = scalar_lea.sflag [#allocation4], %s238
        %s240 = sand.u32 %s31, 1
        %s241 = smul.addr %s240, 16
        %s242 = scalar_lea.vmem [#allocation3], %s241
        %p243 = pneg %p44
        %p244 = pneg %p41
        %s245 = sand.u32 %s23, 1
        %s246 = scalar_lea.sflag [#allocation7], %s245
        %s247 = sand.u32 %s57, 1
        %s248 = smul.addr %s247, 16
        %s249 = scalar_lea.vmem [#allocation6], %s248
        %p250 = pneg %p70
        %p251 = pneg %p67
        %s252 = sand.u32 %s23, 1
        %s253 = scalar_lea.sflag [#allocation7], %s252
        %s254 = sand.u32 %s83, 1
        %s255 = smul.addr %s254, 16
        %s256 = scalar_lea.vmem [#allocation8], %s255
        %p257 = pneg %p96
        %p258 = pneg %p93
        %p259 = pneg %p122
        %p260 = pneg %p119
        %s261 = sand.u32 %s109, 1
        %s262 = scalar_lea.sflag [#allocation5], %s261
        %s263 = sand.u32 %s109, 1
        %s264 = smul.addr %s263, 16
        %s265 = scalar_lea.vmem [#allocation9], %s264
        %s266 = smul.u32 2, %s23
        %s267 = smul.u32 2, %s23
        %s268 = smul.u32 2, %s23
        %s269 = smul.u32 2, %s23
        %v270 = vld [vmem:[%s215] sm:$0xff]
        %v271 = vld [vmem:[%s215 + $0x8] sm:$0xff]
        %v272 = vld [vmem:[%s224] sm:$0xff]
        %v273 = vld [vmem:[%s224 + $0x8] sm:$0xff]
        %v274 = vld [vmem:[%s233] sm:$0xff]
        %v275 = vld [vmem:[%s233 + $0x8] sm:$0xff]
        %v276 = vmul.f32 %v270, %v272
        %v277 = vmul.f32 %v271, %v273
        %vm278 = vcmask 261120
        %v279 = vsel %vm278, %v276, 0.0
        %280 = vadd.xlane.f32.xlu0 %v279
        %v281 = vpop.xlane.xlu0 %280
        %v282 = vsel %vm278, %v277, 0.0
        %283 = vadd.xlane.f32.xlu0 %v282
        %v284 = vpop.xlane.xlu0 %283
        %v285 = vmul.f32 %v281, 0.17677669
        %v286 = vmul.f32 %v284, 0.17677669
        %289 = vrot.lane.b32.xlu0 %v272, 96
        %v290 = vpop.permute.xlu0 %289
        %291 = vrot.lane.b32.xlu0 %v273, 96
        %v292 = vpop.permute.xlu0 %291
        %v295 = vmul.f32 %v270, %v290
        %v296 = vmul.f32 %v271, %v292
        %v297 = vsel %vm278, %v295, 0.0
        %298 = vadd.xlane.f32.xlu0 %v297
        %v299 = vpop.xlane.xlu0 %298
        %v300 = vsel %vm278, %v296, 0.0
        %301 = vadd.xlane.f32.xlu0 %v300
        %v302 = vpop.xlane.xlu0 %301
        %v303 = vmul.f32 %v299, 0.17677669
        %v304 = vmul.f32 %v302, 0.17677669
        %v305 = vmax.f32 %v285, %v303
        %v306 = vmax.f32 %v286, %v304
        %v307 = vsub.f32 %v285, %v305
        %v308 = vsub.f32 %v286, %v306
        %v309 = vmul.f32 %v307, 1.442695
        %v310 = vpow.pop %v309
        %v311 = vmul.f32 %v308, 1.442695
        %v312 = vpow.pop %v311
        %v313 = vsub.f32 %v303, %v305
        %v314 = vsub.f32 %v304, %v306
        %v315 = vmul.f32 %v313, 1.442695
        %v316 = vpow.pop %v315
        %v317 = vmul.f32 %v314, 1.442695
        %v318 = vpow.pop %v317
        %v319 = vadd.f32 %v310, %v316
        %v320 = vadd.f32 %v312, %v318
        %v321 = vmul.f32 %v310, %v274
        %v322 = vmul.f32 %v312, %v275
        %v323 = vmul.f32 %v316, %v274
        %v324 = vmul.f32 %v318, %v275
        %327 = vrot.lane.b32.xlu0 %v323, 96
        %v328 = vpop.permute.xlu0 %327
        %329 = vrot.lane.b32.xlu0 %v324, 96
        %v330 = vpop.permute.xlu0 %329
        %v333 = vadd.f32 %v321, %v328
        %v334 = vadd.f32 %v322, %v330
        %v335 = vrcp.pop %v319
        %v336 = vrcp.pop %v320
        %v337 = vmul.f32 %v333, %v335
        %v338 = vmul.f32 %v334, %v336
        %339 = vst.msk [vmem:[#allocation2] sm:$0xff] %vm278, %v337
        %340 = vst.msk [vmem:[#allocation2 + $0x8] sm:$0xff] %vm278, %v338
        %341 = vrot.lane.b32.xlu0 %v272, 32
        %v342 = vpop.permute.xlu0 %341
        %343 = vrot.lane.b32.xlu0 %v273, 32
        %v344 = vpop.permute.xlu0 %343
        %v347 = vmul.f32 %v270, %v342
        %v348 = vmul.f32 %v271, %v344
        %351 = vrot.lane.b32.xlu0 %v347, 96
        %v352 = vpop.permute.xlu0 %351
        %353 = vrot.lane.b32.xlu0 %v348, 96
        %v354 = vpop.permute.xlu0 %353
        %v357 = vsel %vm278, %v352, 0.0
        %358 = vadd.xlane.f32.xlu0 %v357
        %v359 = vpop.xlane.xlu0 %358
        %v360 = vsel %vm278, %v354, 0.0
        %361 = vadd.xlane.f32.xlu0 %v360
        %v362 = vpop.xlane.xlu0 %361
        %v363 = vmul.f32 %v359, 0.17677669
        %v364 = vmul.f32 %v362, 0.17677669
        %367 = vrot.lane.b32.xlu0 %v276, 96
        %v368 = vpop.permute.xlu0 %367
        %369 = vrot.lane.b32.xlu0 %v277, 96
        %v370 = vpop.permute.xlu0 %369
        %v373 = vsel %vm278, %v368, 0.0
        %374 = vadd.xlane.f32.xlu0 %v373
        %v375 = vpop.xlane.xlu0 %374
        %v376 = vsel %vm278, %v370, 0.0
        %377 = vadd.xlane.f32.xlu0 %v376
        %v378 = vpop.xlane.xlu0 %377
        %v379 = vmul.f32 %v375, 0.17677669
        %v380 = vmul.f32 %v378, 0.17677669
        %v381 = vmax.f32 %v363, %v379
        %v382 = vmax.f32 %v364, %v380
        %v383 = vsub.f32 %v363, %v381
        %v384 = vsub.f32 %v364, %v382
        %v385 = vmul.f32 %v383, 1.442695
        %v386 = vpow.pop %v385
        %v387 = vmul.f32 %v384, 1.442695
        %v388 = vpow.pop %v387
        %v389 = vsub.f32 %v379, %v381
        %v390 = vsub.f32 %v380, %v382
        %v391 = vmul.f32 %v389, 1.442695
        %v392 = vpow.pop %v391
        %v393 = vmul.f32 %v390, 1.442695
        %v394 = vpow.pop %v393
        %v395 = vadd.f32 %v386, %v392
        %v396 = vadd.f32 %v388, %v394
        %v397 = vmul.f32 %v386, %v274
        %v398 = vmul.f32 %v388, %v275
        %v399 = vmul.f32 %v392, %v274
        %v400 = vmul.f32 %v394, %v275
        %403 = vrot.lane.b32.xlu0 %v399, 96
        %v404 = vpop.permute.xlu0 %403
        %405 = vrot.lane.b32.xlu0 %v400, 96
        %v406 = vpop.permute.xlu0 %405
        %v409 = vadd.f32 %v397, %v404
        %v410 = vadd.f32 %v398, %v406
        %v411 = vrcp.pop %v395
        %v412 = vrcp.pop %v396
        %v413 = vmul.f32 %v409, %v411
        %v414 = vmul.f32 %v410, %v412
        %417 = vrot.lane.b32.xlu0 %v413, 32
        %v418 = vpop.permute.xlu0 %417
        %419 = vrot.lane.b32.xlu0 %v414, 32
        %v420 = vpop.permute.xlu0 %419
        %vm423 = vcmask 523520
        %424 = vst.msk [vmem:[#allocation2] sm:$0xff] %vm423, %v418
        %425 = vst.msk [vmem:[#allocation2 + $0x8] sm:$0xff] %vm423, %v420
        %v426 = vld [vmem:[#allocation2] sm:$0xff]
        %v427 = vld [vmem:[#allocation2 + $0x8] sm:$0xff]
        %430 = vrot.lane.b32.xlu0 %v426, 96
        %v431 = vpop.permute.xlu0 %430
        %432 = vrot.lane.b32.xlu0 %v427, 96
        %v433 = vpop.permute.xlu0 %432
        %v436 = vadd.f32 %v426, %v431
        %v437 = vadd.f32 %v427, %v433
        %v438 = vlaneseq
        %v439 = vshrl.u32 %v438, 7
        %v440 = vadd.s32 %v439, 8
        %v441 = vlaneseq
        %v442 = vand.u32 %v441, 127
        %v443 = vmul.u32 %v442, 4
        %vm444 = vcmp.ge.s32.totalorder %v439, %v443
        %vm445 = vcmp.ge.s32.totalorder %v440, %v443
        %v446 = vadd.s32 %v443, 4
        %vm447 = vcmp.lt.s32.totalorder %v439, %v446
        %vm448 = vcmp.lt.s32.totalorder %v440, %v446
        %vm449 = vmand %vm444, %vm447
        %vm450 = vmand %vm445, %vm448
        %v451 = vsel %vm449, 1, 0
        %v452 = vsel %vm450, 1, 0
        %v453 = vcvt.s32.f32 %v451
        %v454 = vcvt.s32.f32 %v452
        %v455 = vmul.u32 %v439, 4
        %vm456 = vcmp.ge.s32.totalorder %v442, %v455
        %v457 = vadd.s32 %v455, 4
        %vm458 = vcmp.lt.s32.totalorder %v442, %v457
        %vm459 = vmand %vm456, %vm458
        %v460 = vsel %vm459, 1, 0
        %v461 = vcvt.s32.f32 %v460
        %vm462 = vcmask 130048
        %v464 = vsel %vm462, %v461, 0
        %466 = vmatprep.subr.mxu0 0.0
        %467 = vmatpush1.msra.mxu0 0.0
        %468 = vmatprep.subr.mxu0 0.0
        %469 = vmatpush1.msra.mxu0 0.0
        %470 = vmatprep.subr.mxu0 0.0
        %471 = vmatpush1.msra.mxu0 0.0
        %472 = vmatprep.subr.mxu0 0.0
        %473 = vmatpush1.msra.mxu0 0.0
        %474 = vmatprep.subr.mxu0 0.0
        %475 = vmatpush1.msra.mxu0 0.0
        %476 = vmatprep.subr.mxu0 0.0
        %477 = vmatpush1.msra.mxu0 0.0
        %478 = vmatprep.subr.mxu0 0.0
        %479 = vmatpush1.msra.mxu0 0.0
        %480 = vmatprep.subr.mxu0 0.0
        %481 = vmatpush1.msra.mxu0 0.0
        %482 = vmatprep.subr.mxu0 0.0
        %483 = vmatpush1.msra.mxu0 0.0
        %484 = vmatprep.subr.mxu0 0.0
        %485 = vmatpush1.msra.mxu0 0.0
        %486 = vmatprep.subr.mxu0 0.0
        %487 = vmatpush1.msra.mxu0 0.0
        %488 = vmatprep.subr.mxu0 0.0
        %489 = vmatpush1.msra.mxu0 0.0
        %490 = vmatprep.subr.mxu0 0.0
        %491 = vmatpush1.msra.mxu0 0.0
        %492 = vmatprep.subr.mxu0 0.0
        %493 = vmatpush1.msra.mxu0 0.0
        %494 = vmatprep.subr.mxu0 0.0
        %495 = vmatpush1.msra.mxu0 %v437
        %496 = vmatprep.subr.mxu0 0.0
        %497 = vmatpush1.msra.mxu0 %v436
        %498 = vmatprep.subr.mxu0 0.0
        %499 = vmatpush2.msra.mxu0 0.0
        %500 = vmatprep.subr.mxu0 0.0
        %501 = vmatpush2.msra.mxu0 0.0
        %502 = vmatprep.subr.mxu0 0.0
        %503 = vmatpush2.msra.mxu0 0.0
        %504 = vmatprep.subr.mxu0 0.0
        %505 = vmatpush2.msra.mxu0 0.0
        %506 = vmatprep.subr.mxu0 0.0
        %507 = vmatpush2.msra.mxu0 0.0
        %508 = vmatprep.subr.mxu0 0.0
        %509 = vmatpush2.msra.mxu0 0.0
        %510 = vmatprep.subr.mxu0 0.0
        %511 = vmatpush2.msra.mxu0 0.0
        %512 = vmatprep.subr.mxu0 0.0
        %513 = vmatpush2.msra.mxu0 0.0
        %514 = vmatprep.subr.mxu0 0.0
        %515 = vmatpush2.msra.mxu0 0.0
        %516 = vmatprep.subr.mxu0 0.0
        %517 = vmatpush2.msra.mxu0 0.0
        %518 = vmatprep.subr.mxu0 0.0
        %519 = vmatpush2.msra.mxu0 0.0
        %520 = vmatprep.subr.mxu0 0.0
        %521 = vmatpush2.msra.mxu0 0.0
        %522 = vmatprep.subr.mxu0 0.0
        %523 = vmatpush2.msra.mxu0 0.0
        %524 = vmatprep.subr.mxu0 0.0
        %525 = vmatpush2.msra.mxu0 0.0
        %526 = vmatprep.subr.mxu0 0.0
        %527 = vmatpush2.msra.mxu0 0.0
        %528 = vmatprep.subr.mxu0 0.0
        %529 = vmatpush2.msra.mxu0 0.0
        %530 = vmatprep.mubr.f32.mxu0 0.0
        %531 = vmatmul.mubr.f32.gmra.mxu0 %v464
        %v532 = vpop.f32.mrf.mxu0
        %v533 = vadd.f32 1e-08, %v532
        %v534 = vpop.f32.mrf.mxu0
        %535 = vdwg.mxu0
        %v536 = vrcp.pop %v533
        %v537 = vmul.f32 %v536, 0.5
        %vm538 = vcmask 31744
        %v540 = vsel %vm538, %v453, 0
        %v543 = vsel %vm538, %v454, 0
        %vm545 = vcmask 1043456
        %v547 = vsel %vm545, %v537, 0
        %549 = vmatprep.subr.mxu0 0.0
        %550 = vmatpush1.msra.mxu0 0.0
        %551 = vmatprep.subr.mxu0 0.0
        %552 = vmatpush1.msra.mxu0 0.0
        %553 = vmatprep.subr.mxu0 0.0
        %554 = vmatpush1.msra.mxu0 0.0
        %555 = vmatprep.subr.mxu0 0.0
        %556 = vmatpush1.msra.mxu0 0.0
        %557 = vmatprep.subr.mxu0 0.0
        %558 = vmatpush1.msra.mxu0 0.0
        %559 = vmatprep.subr.mxu0 0.0
        %560 = vmatpush1.msra.mxu0 0.0
        %561 = vmatprep.subr.mxu0 0.0
        %562 = vmatpush1.msra.mxu0 0.0
        %563 = vmatprep.subr.mxu0 0.0
        %564 = vmatpush1.msra.mxu0 0.0
        %565 = vmatprep.subr.mxu0 0.0
        %566 = vmatpush1.msra.mxu0 0.0
        %567 = vmatprep.subr.mxu0 0.0
        %568 = vmatpush1.msra.mxu0 0.0
        %569 = vmatprep.subr.mxu0 0.0
        %570 = vmatpush1.msra.mxu0 0.0
        %571 = vmatprep.subr.mxu0 0.0
        %572 = vmatpush1.msra.mxu0 0.0
        %573 = vmatprep.subr.mxu0 0.0
        %574 = vmatpush1.msra.mxu0 0.0
        %575 = vmatprep.subr.mxu0 0.0
        %576 = vmatpush1.msra.mxu0 0.0
        %577 = vmatprep.subr.mxu0 0.0
        %578 = vmatpush1.msra.mxu0 0.0
        %579 = vmatprep.subr.mxu0 0.0
        %580 = vmatpush1.msra.mxu0 %v547
        %581 = vmatprep.subr.mxu0 0.0
        %582 = vmatpush2.msra.mxu0 0.0
        %583 = vmatprep.subr.mxu0 0.0
        %584 = vmatpush2.msra.mxu0 0.0
        %585 = vmatprep.subr.mxu0 0.0
        %586 = vmatpush2.msra.mxu0 0.0
        %587 = vmatprep.subr.mxu0 0.0
        %588 = vmatpush2.msra.mxu0 0.0
        %589 = vmatprep.subr.mxu0 0.0
        %590 = vmatpush2.msra.mxu0 0.0
        %591 = vmatprep.subr.mxu0 0.0
        %592 = vmatpush2.msra.mxu0 0.0
        %593 = vmatprep.subr.mxu0 0.0
        %594 = vmatpush2.msra.mxu0 0.0
        %595 = vmatprep.subr.mxu0 0.0
        %596 = vmatpush2.msra.mxu0 0.0
        %597 = vmatprep.subr.mxu0 0.0
        %598 = vmatpush2.msra.mxu0 0.0
        %599 = vmatprep.subr.mxu0 0.0
        %600 = vmatpush2.msra.mxu0 0.0
        %601 = vmatprep.subr.mxu0 0.0
        %602 = vmatpush2.msra.mxu0 0.0
        %603 = vmatprep.subr.mxu0 0.0
        %604 = vmatpush2.msra.mxu0 0.0
        %605 = vmatprep.subr.mxu0 0.0
        %606 = vmatpush2.msra.mxu0 0.0
        %607 = vmatprep.subr.mxu0 0.0
        %608 = vmatpush2.msra.mxu0 0.0
        %609 = vmatprep.subr.mxu0 0.0
        %610 = vmatpush2.msra.mxu0 0.0
        %611 = vmatprep.subr.mxu0 0.0
        %612 = vmatpush2.msra.mxu0 0.0
        %613 = vmatprep.mubr.f32.mxu0 0.0
        %614 = vmatmul.mubr.f32.gmra.mxu0 %v540
        %v615 = vpop.f32.mrf.mxu0
        %v616 = vadd.f32 0.0, %v615
        %v617 = vpop.f32.mrf.mxu0
        %618 = vmatprep.mubr.f32.mxu0 0.0
        %619 = vmatmul.mubr.f32.gmra.mxu0 %v543
        %v620 = vpop.f32.mrf.mxu0
        %v621 = vadd.f32 0.0, %v620
        %v622 = vpop.f32.mrf.mxu0
        %623 = vdwg.mxu0
        %v624 = vmul.f32 %v426, %v616
        %v625 = vmul.f32 %v427, %v621
        %626 = vst.msk [vmem:[%s265] sm:$0xff] %vm278, %v624
        %627 = vst.msk [vmem:[%s265 + $0x8] sm:$0xff] %vm278, %v625
        %v628 = vld [vmem:[#allocation2] sm:$0xff]
        %v629 = vld [vmem:[#allocation2 + $0x8] sm:$0xff]
        %632 = vrot.lane.b32.xlu0 %v616, 32
        %v633 = vpop.permute.xlu0 %632
        %634 = vrot.lane.b32.xlu0 %v621, 32
        %v635 = vpop.permute.xlu0 %634
        %v638 = vmul.f32 %v628, %v633
        %v639 = vmul.f32 %v629, %v635
        %640 = vst.msk [vmem:[%s265] sm:$0xff] %vm423, %v638
        %641 = vst.msk [vmem:[%s265 + $0x8] sm:$0xff] %vm423, %v639
        %v642 = vld [vmem:[%s215] sm:$0xff]
        %v643 = vld [vmem:[%s215 + $0x8] sm:$0xff]
        %v644 = vld [vmem:[%s224] sm:$0xff]
        %v645 = vld [vmem:[%s224 + $0x8] sm:$0xff]
        %v646 = vld [vmem:[%s233] sm:$0xff]
        %v647 = vld [vmem:[%s233 + $0x8] sm:$0xff]
        %v648 = vmul.f32 %v642, %v644
        %v649 = vmul.f32 %v643, %v645
        %652 = vrot.lane.b32.xlu0 %v648, 64
        %v653 = vpop.permute.xlu0 %652
        %654 = vrot.lane.b32.xlu0 %v649, 64
        %v655 = vpop.permute.xlu0 %654
        %v658 = vsel %vm278, %v653, 0.0
        %659 = vadd.xlane.f32.xlu0 %v658
        %v660 = vpop.xlane.xlu0 %659
        %v661 = vsel %vm278, %v655, 0.0
        %662 = vadd.xlane.f32.xlu0 %v661
        %v663 = vpop.xlane.xlu0 %662
        %v664 = vmul.f32 %v660, 0.17677669
        %v665 = vmul.f32 %v663, 0.17677669
        %668 = vrot.lane.b32.xlu0 %v644, 96
        %v669 = vpop.permute.xlu0 %668
        %670 = vrot.lane.b32.xlu0 %v645, 96
        %v671 = vpop.permute.xlu0 %670
        %v674 = vmul.f32 %v642, %v669
        %v675 = vmul.f32 %v643, %v671
        %678 = vrot.lane.b32.xlu0 %v674, 64
        %v679 = vpop.permute.xlu0 %678
        %680 = vrot.lane.b32.xlu0 %v675, 64
        %v681 = vpop.permute.xlu0 %680
        %v684 = vsel %vm278, %v679, 0.0
        %685 = vadd.xlane.f32.xlu0 %v684
        %v686 = vpop.xlane.xlu0 %685
        %v687 = vsel %vm278, %v681, 0.0
        %688 = vadd.xlane.f32.xlu0 %v687
        %v689 = vpop.xlane.xlu0 %688
        %v690 = vmul.f32 %v686, 0.17677669
        %v691 = vmul.f32 %v689, 0.17677669
        %v692 = vmax.f32 %v664, %v690
        %v693 = vmax.f32 %v665, %v691
        %v694 = vsub.f32 %v664, %v692
        %v695 = vsub.f32 %v665, %v693
        %v696 = vmul.f32 %v694, 1.442695
        %v697 = vpow.pop %v696
        %v698 = vmul.f32 %v695, 1.442695
        %v699 = vpow.pop %v698
        %v700 = vsub.f32 %v690, %v692
        %v701 = vsub.f32 %v691, %v693
        %v702 = vmul.f32 %v700, 1.442695
        %v703 = vpow.pop %v702
        %v704 = vmul.f32 %v701, 1.442695
        %v705 = vpow.pop %v704
        %v706 = vadd.f32 %v697, %v703
        %v707 = vadd.f32 %v699, %v705
        %v708 = vmul.f32 %v697, %v646
        %v709 = vmul.f32 %v699, %v647
        %v710 = vmul.f32 %v703, %v646
        %v711 = vmul.f32 %v705, %v647
        %714 = vrot.lane.b32.xlu0 %v710, 96
        %v715 = vpop.permute.xlu0 %714
        %716 = vrot.lane.b32.xlu0 %v711, 96
        %v717 = vpop.permute.xlu0 %716
        %v720 = vadd.f32 %v708, %v715
        %v721 = vadd.f32 %v709, %v717
        %v722 = vrcp.pop %v706
        %v723 = vrcp.pop %v707
        %v724 = vmul.f32 %v720, %v722
        %v725 = vmul.f32 %v721, %v723
        %vm726 = vcmask 785920
        %727 = vst.msk [vmem:[#allocation2] sm:$0xff] %vm726, %v724
        %728 = vst.msk [vmem:[#allocation2 + $0x8] sm:$0xff] %vm726, %v725
        %729 = vrot.lane.b32.xlu0 %v644, 32
        %v730 = vpop.permute.xlu0 %729
        %731 = vrot.lane.b32.xlu0 %v645, 32
        %v732 = vpop.permute.xlu0 %731
        %v735 = vmul.f32 %v642, %v730
        %v736 = vmul.f32 %v643, %v732
        %739 = vrot.lane.b32.xlu0 %v735, 32
        %v740 = vpop.permute.xlu0 %739
        %741 = vrot.lane.b32.xlu0 %v736, 32
        %v742 = vpop.permute.xlu0 %741
        %v745 = vsel %vm278, %v740, 0.0
        %746 = vadd.xlane.f32.xlu0 %v745
        %v747 = vpop.xlane.xlu0 %746
        %v748 = vsel %vm278, %v742, 0.0
        %749 = vadd.xlane.f32.xlu0 %v748
        %v750 = vpop.xlane.xlu0 %749
        %v751 = vmul.f32 %v747, 0.17677669
        %v752 = vmul.f32 %v750, 0.17677669
        %753 = vrot.lane.b32.xlu0 %v648, 32
        %v754 = vpop.permute.xlu0 %753
        %755 = vrot.lane.b32.xlu0 %v649, 32
        %v756 = vpop.permute.xlu0 %755
        %v759 = vsel %vm278, %v754, 0.0
        %760 = vadd.xlane.f32.xlu0 %v759
        %v761 = vpop.xlane.xlu0 %760
        %v762 = vsel %vm278, %v756, 0.0
        %763 = vadd.xlane.f32.xlu0 %v762
        %v764 = vpop.xlane.xlu0 %763
        %v765 = vmul.f32 %v761, 0.17677669
        %v766 = vmul.f32 %v764, 0.17677669
        %v767 = vmax.f32 %v751, %v765
        %v768 = vmax.f32 %v752, %v766
        %v769 = vsub.f32 %v751, %v767
        %v770 = vsub.f32 %v752, %v768
        %v771 = vmul.f32 %v769, 1.442695
        %v772 = vpow.pop %v771
        %v773 = vmul.f32 %v770, 1.442695
        %v774 = vpow.pop %v773
        %v775 = vsub.f32 %v765, %v767
        %v776 = vsub.f32 %v766, %v768
        %v777 = vmul.f32 %v775, 1.442695
        %v778 = vpow.pop %v777
        %v779 = vmul.f32 %v776, 1.442695
        %v780 = vpow.pop %v779
        %v781 = vadd.f32 %v772, %v778
        %v782 = vadd.f32 %v774, %v780
        %v783 = vmul.f32 %v772, %v646
        %v784 = vmul.f32 %v774, %v647
        %v785 = vmul.f32 %v778, %v646
        %v786 = vmul.f32 %v780, %v647
        %789 = vrot.lane.b32.xlu0 %v785, 96
        %v790 = vpop.permute.xlu0 %789
        %791 = vrot.lane.b32.xlu0 %v786, 96
        %v792 = vpop.permute.xlu0 %791
        %v795 = vadd.f32 %v783, %v790
        %v796 = vadd.f32 %v784, %v792
        %v797 = vrcp.pop %v781
        %v798 = vrcp.pop %v782
        %v799 = vmul.f32 %v795, %v797
        %v800 = vmul.f32 %v796, %v798
        %803 = vrot.lane.b32.xlu0 %v799, 32
        %v804 = vpop.permute.xlu0 %803
        %805 = vrot.lane.b32.xlu0 %v800, 32
        %v806 = vpop.permute.xlu0 %805
        %vm809 = vcmask 1048320
        %810 = vst.msk [vmem:[#allocation2] sm:$0xff] %vm809, %v804
        %811 = vst.msk [vmem:[#allocation2 + $0x8] sm:$0xff] %vm809, %v806
        %v812 = vld [vmem:[#allocation2] sm:$0xff]
        %v813 = vld [vmem:[#allocation2 + $0x8] sm:$0xff]
        %816 = vrot.lane.b32.xlu0 %v812, 96
        %v817 = vpop.permute.xlu0 %816
        %818 = vrot.lane.b32.xlu0 %v813, 96
        %v819 = vpop.permute.xlu0 %818
        %v822 = vadd.f32 %v812, %v817
        %v823 = vadd.f32 %v813, %v819
        %v824 = vmul.u32 %v442, 8
        %vm825 = vcmp.ge.s32.totalorder %v439, %v824
        %vm826 = vcmp.ge.s32.totalorder %v440, %v824
        %v827 = vadd.s32 %v824, 8
        %vm828 = vcmp.lt.s32.totalorder %v439, %v827
        %vm829 = vcmp.lt.s32.totalorder %v440, %v827
        %vm830 = vmand %vm825, %vm828
        %vm831 = vmand %vm826, %vm829
        %v832 = vsel %vm830, 1, 0
        %v833 = vsel %vm831, 1, 0
        %v834 = vcvt.s32.f32 %v832
        %v835 = vcvt.s32.f32 %v833
        %v836 = vmul.u32 %v439, 8
        %vm837 = vcmp.ge.s32.totalorder %v442, %v836
        %v838 = vadd.s32 %v836, 8
        %vm839 = vcmp.lt.s32.totalorder %v442, %v838
        %vm840 = vmand %vm837, %vm839
        %v841 = vsel %vm840, 1, 0
        %v842 = vcvt.s32.f32 %v841
        %845 = vrot.lane.b32.xlu0 %v822, 64
        %v846 = vpop.permute.xlu0 %845
        %847 = vrot.lane.b32.xlu0 %v823, 64
        %v848 = vpop.permute.xlu0 %847
        %v852 = vsel %vm462, %v842, 0
        %854 = vmatprep.subr.mxu0 0.0
        %855 = vmatpush1.msra.mxu0 0.0
        %856 = vmatprep.subr.mxu0 0.0
        %857 = vmatpush1.msra.mxu0 0.0
        %858 = vmatprep.subr.mxu0 0.0
        %859 = vmatpush1.msra.mxu0 0.0
        %860 = vmatprep.subr.mxu0 0.0
        %861 = vmatpush1.msra.mxu0 0.0
        %862 = vmatprep.subr.mxu0 0.0
        %863 = vmatpush1.msra.mxu0 0.0
        %864 = vmatprep.subr.mxu0 0.0
        %865 = vmatpush1.msra.mxu0 0.0
        %866 = vmatprep.subr.mxu0 0.0
        %867 = vmatpush1.msra.mxu0 0.0
        %868 = vmatprep.subr.mxu0 0.0
        %869 = vmatpush1.msra.mxu0 0.0
        %870 = vmatprep.subr.mxu0 0.0
        %871 = vmatpush1.msra.mxu0 0.0
        %872 = vmatprep.subr.mxu0 0.0
        %873 = vmatpush1.msra.mxu0 0.0
        %874 = vmatprep.subr.mxu0 0.0
        %875 = vmatpush1.msra.mxu0 0.0
        %876 = vmatprep.subr.mxu0 0.0
        %877 = vmatpush1.msra.mxu0 0.0
        %878 = vmatprep.subr.mxu0 0.0
        %879 = vmatpush1.msra.mxu0 0.0
        %880 = vmatprep.subr.mxu0 0.0
        %881 = vmatpush1.msra.mxu0 0.0
        %882 = vmatprep.subr.mxu0 0.0
        %883 = vmatpush1.msra.mxu0 %v848
        %884 = vmatprep.subr.mxu0 0.0
        %885 = vmatpush1.msra.mxu0 %v846
        %886 = vmatprep.subr.mxu0 0.0
        %887 = vmatpush2.msra.mxu0 0.0
        %888 = vmatprep.subr.mxu0 0.0
        %889 = vmatpush2.msra.mxu0 0.0
        %890 = vmatprep.subr.mxu0 0.0
        %891 = vmatpush2.msra.mxu0 0.0
        %892 = vmatprep.subr.mxu0 0.0
        %893 = vmatpush2.msra.mxu0 0.0
        %894 = vmatprep.subr.mxu0 0.0
        %895 = vmatpush2.msra.mxu0 0.0
        %896 = vmatprep.subr.mxu0 0.0
        %897 = vmatpush2.msra.mxu0 0.0
        %898 = vmatprep.subr.mxu0 0.0
        %899 = vmatpush2.msra.mxu0 0.0
        %900 = vmatprep.subr.mxu0 0.0
        %901 = vmatpush2.msra.mxu0 0.0
        %902 = vmatprep.subr.mxu0 0.0
        %903 = vmatpush2.msra.mxu0 0.0
        %904 = vmatprep.subr.mxu0 0.0
        %905 = vmatpush2.msra.mxu0 0.0
        %906 = vmatprep.subr.mxu0 0.0
        %907 = vmatpush2.msra.mxu0 0.0
        %908 = vmatprep.subr.mxu0 0.0
        %909 = vmatpush2.msra.mxu0 0.0
        %910 = vmatprep.subr.mxu0 0.0
        %911 = vmatpush2.msra.mxu0 0.0
        %912 = vmatprep.subr.mxu0 0.0
        %913 = vmatpush2.msra.mxu0 0.0
        %914 = vmatprep.subr.mxu0 0.0
        %915 = vmatpush2.msra.mxu0 0.0
        %916 = vmatprep.subr.mxu0 0.0
        %917 = vmatpush2.msra.mxu0 0.0
        %918 = vmatprep.mubr.f32.mxu0 0.0
        %919 = vmatmul.mubr.f32.gmra.mxu0 %v852
        %v920 = vpop.f32.mrf.mxu0
        %v921 = vadd.f32 1e-08, %v920
        %v922 = vpop.f32.mrf.mxu0
        %923 = vdwg.mxu0
        %v924 = vrcp.pop %v921
        %v925 = vmul.f32 %v924, 0.5
        %vm926 = vcmask 15360
        %v928 = vsel %vm926, %v834, 0
        %v931 = vsel %vm926, %v835, 0
        %vm933 = vcmask 1041408
        %v935 = vsel %vm933, %v925, 0
        %937 = vmatprep.subr.mxu0 0.0
        %938 = vmatpush1.msra.mxu0 0.0
        %939 = vmatprep.subr.mxu0 0.0
        %940 = vmatpush1.msra.mxu0 0.0
        %941 = vmatprep.subr.mxu0 0.0
        %942 = vmatpush1.msra.mxu0 0.0
        %943 = vmatprep.subr.mxu0 0.0
        %944 = vmatpush1.msra.mxu0 0.0
        %945 = vmatprep.subr.mxu0 0.0
        %946 = vmatpush1.msra.mxu0 0.0
        %947 = vmatprep.subr.mxu0 0.0
        %948 = vmatpush1.msra.mxu0 0.0
        %949 = vmatprep.subr.mxu0 0.0
        %950 = vmatpush1.msra.mxu0 0.0
        %951 = vmatprep.subr.mxu0 0.0
        %952 = vmatpush1.msra.mxu0 0.0
        %953 = vmatprep.subr.mxu0 0.0
        %954 = vmatpush1.msra.mxu0 0.0
        %955 = vmatprep.subr.mxu0 0.0
        %956 = vmatpush1.msra.mxu0 0.0
        %957 = vmatprep.subr.mxu0 0.0
        %958 = vmatpush1.msra.mxu0 0.0
        %959 = vmatprep.subr.mxu0 0.0
        %960 = vmatpush1.msra.mxu0 0.0
        %961 = vmatprep.subr.mxu0 0.0
        %962 = vmatpush1.msra.mxu0 0.0
        %963 = vmatprep.subr.mxu0 0.0
        %964 = vmatpush1.msra.mxu0 0.0
        %965 = vmatprep.subr.mxu0 0.0
        %966 = vmatpush1.msra.mxu0 0.0
        %967 = vmatprep.subr.mxu0 0.0
        %968 = vmatpush1.msra.mxu0 %v935
        %969 = vmatprep.subr.mxu0 0.0
        %970 = vmatpush2.msra.mxu0 0.0
        %971 = vmatprep.subr.mxu0 0.0
        %972 = vmatpush2.msra.mxu0 0.0
        %973 = vmatprep.subr.mxu0 0.0
        %974 = vmatpush2.msra.mxu0 0.0
        %975 = vmatprep.subr.mxu0 0.0
        %976 = vmatpush2.msra.mxu0 0.0
        %977 = vmatprep.subr.mxu0 0.0
        %978 = vmatpush2.msra.mxu0 0.0
        %979 = vmatprep.subr.mxu0 0.0
        %980 = vmatpush2.msra.mxu0 0.0
        %981 = vmatprep.subr.mxu0 0.0
        %982 = vmatpush2.msra.mxu0 0.0
        %983 = vmatprep.subr.mxu0 0.0
        %984 = vmatpush2.msra.mxu0 0.0
        %985 = vmatprep.subr.mxu0 0.0
        %986 = vmatpush2.msra.mxu0 0.0
        %987 = vmatprep.subr.mxu0 0.0
        %988 = vmatpush2.msra.mxu0 0.0
        %989 = vmatprep.subr.mxu0 0.0
        %990 = vmatpush2.msra.mxu0 0.0
        %991 = vmatprep.subr.mxu0 0.0
        %992 = vmatpush2.msra.mxu0 0.0
        %993 = vmatprep.subr.mxu0 0.0
        %994 = vmatpush2.msra.mxu0 0.0
        %995 = vmatprep.subr.mxu0 0.0
        %996 = vmatpush2.msra.mxu0 0.0
        %997 = vmatprep.subr.mxu0 0.0
        %998 = vmatpush2.msra.mxu0 0.0
        %999 = vmatprep.subr.mxu0 0.0
        %1000 = vmatpush2.msra.mxu0 0.0
        %1001 = vmatprep.mubr.f32.mxu0 0.0
        %1002 = vmatmul.mubr.f32.gmra.mxu0 %v928
        %v1003 = vpop.f32.mrf.mxu0
        %v1004 = vadd.f32 0.0, %v1003
        %v1005 = vpop.f32.mrf.mxu0
        %1006 = vmatprep.mubr.f32.mxu0 0.0
        %1007 = vmatmul.mubr.f32.gmra.mxu0 %v931
        %v1008 = vpop.f32.mrf.mxu0
        %v1009 = vadd.f32 0.0, %v1008
        %v1010 = vpop.f32.mrf.mxu0
        %1011 = vdwg.mxu0
        %1014 = vrot.lane.b32.xlu0 %v1004, 64
        %v1015 = vpop.permute.xlu0 %1014
        %1016 = vrot.lane.b32.xlu0 %v1009, 64
        %v1017 = vpop.permute.xlu0 %1016
        %v1020 = vmul.f32 %v812, %v1015
        %v1021 = vmul.f32 %v813, %v1017
        %1022 = vst.msk [vmem:[%s265] sm:$0xff] %vm726, %v1020
        %1023 = vst.msk [vmem:[%s265 + $0x8] sm:$0xff] %vm726, %v1021
        %v1024 = vld [vmem:[#allocation2] sm:$0xff]
        %v1025 = vld [vmem:[#allocation2 + $0x8] sm:$0xff]
        %1026 = vrot.lane.b32.xlu0 %v1004, 96
        %v1027 = vpop.permute.xlu0 %1026
        %1028 = vrot.lane.b32.xlu0 %v1009, 96
        %v1029 = vpop.permute.xlu0 %1028
        %v1032 = vmul.f32 %v1024, %v1027
        %v1033 = vmul.f32 %v1025, %v1029
        %1034 = vst.msk [vmem:[%s265] sm:$0xff] %vm809, %v1032
        %1035 = vst.msk [vmem:[%s265 + $0x8] sm:$0xff] %vm809, %v1033
        %s1036 = sand.u32 %s109, 1
        %s1037 = scalar_lea.sflag [#allocation5], %s1036
        %s1038 = sand.u32 %s109, 1
        %s1039 = smul.addr %s1038, 16
        %s1040 = scalar_lea.vmem [#allocation9], %s1039
        // Predicated region
        $region45: #{tpu_custom_call.1} parent=31 // pred_check
          %p1041 = pneg %p119
        $region46: #{tpu_custom_call.1} parent=31 // pred_check_branch
          %1043 = sbr.rel (%p1041) target = $region48
        $region47: #{tpu_custom_call.1} parent=31 // pred_region
          %s1044 = smul.u32 2, %s23
          %s1046 = ssub.s32 256, 256
          %1047 = vsyncadd %s1037, %s1046
          %s1048 = smul.addr %s1044, 128
          %s1049 = scalar_lea.hbm %s3, %s1048
          %s1050 = sshll.u32 %s1040, 4
          %s1051 = int_to_ptr.vmem [resolvable:$true] %s1050
          %1056 = dma.vmem_to_hbm [thread:$0]  %s1051, 256, %s1049, %s1037, 128, 128, 8
        $region48: #{tpu_custom_call.1} parent=31 // pred_fallthru
          _
      $region32: #{tpu_custom_call.1} parent=5 // pred_fallthru
        _
      %p1057 = scmp.le.s32.totalorder 2, %s18
      // Predicated region
      $region49: #{tpu_custom_call.1} parent=5 // pred_check
        %p1058 = pneg %p1057
      $region50: #{tpu_custom_call.1} parent=5 // pred_check_branch
        %1060 = sbr.rel (%p1058) target = $region52
      $region51: #{tpu_custom_call.1} parent=5 // pred_region
        %s1061 = ssub.s32 %s18, 2
        // Predicated region
        $region53: #{tpu_custom_call.1} parent=51 // pred_check
          %p1062 = pneg %p125
        $region54: #{tpu_custom_call.1} parent=51 // pred_check_branch
          %1064 = sbr.rel (%p1062) target = $region56
        $region55: #{tpu_custom_call.1} parent=51 // pred_region
          %s1065 = sand.u32 %s110, 1
          %s1066 = scalar_lea.sflag [#allocation5], %s1065
          %s1067 = sand.u32 %s110, 1
          %s1068 = smul.addr %s1067, 16
          %s1069 = scalar_lea.vmem [#allocation9], %s1068
          %1070 = dma.done %s1066, 256
        $region56: #{tpu_custom_call.1} parent=51 // pred_fallthru
          _
      $region52: #{tpu_custom_call.1} parent=5 // pred_fallthru
        _
    $region6: #{tpu_custom_call.1} parent=1 // loop_footer
      %s22 = sadd.s32 1, %s18
    $region7: #{tpu_custom_call.1} parent=1 // loop_footer_branch
      %17 = sbr.rel target = $region3
    $region8: #{tpu_custom_call.1} parent=1 // loop_exit
      _
    %1071 = vsyncpa [#allocation4], 1
    %s1072 = scalar_lea.sflag [#allocation4], 1
    %1073 = vsyncpa %s1072, 1
    %1074 = vsyncpa [#allocation7], 1
    %s1075 = scalar_lea.sflag [#allocation7], 1
    %1076 = vsyncpa %s1075, 1
    %1077 = vsyncpa [#allocation5], 1
    %s1078 = scalar_lea.sflag [#allocation5], 1
    %1079 = vsyncpa %s1078, 1

</llo_original>
